<compile_context>
chip_gen: v7x
topology: tpu7x:2x2x1
jax: 0.10.0
libtpu: 0.0.40
codegen_flags: <defaults>
</compile_context>

<pallas_src>
import jax
import jax.numpy as jnp
from jax.experimental import pallas as pl
from jax.experimental.pallas import tpu as pltpu

# ---------------- small config consistent with the module ----------------
B = 2           # batch
S = 8           # sequence length
D = 32          # model_dim
D_FF = 4 * D    # MLP hidden (= 128, lane-dense)

_GELU_C = 0.7978845608028654  # sqrt(2/pi)


# ------------------------------ Pallas kernel ------------------------------
def _mlp_kernel(x_ref, w1_ref, b1_ref, w2_ref, b2_ref, out_ref):
    # Read activations / params once into registers; no VMEM scratch.
    x = x_ref[...]          # (B*S, D)   f32
    b1 = b1_ref[...]        # (1, 4D)
    b2 = b2_ref[...]        # (1, D)

    # Linear 1: (B*S, D) @ (D, 4D) -> lane-dense (B*S, 128) hidden.
    h = jnp.dot(x, w1_ref[...], preferred_element_type=jnp.float32) + b1
    # GELU('tanh') approximation, matching PyTorch nn.GELU('tanh').
    h = 0.5 * h * (1.0 + jnp.tanh(_GELU_C * (h + 0.044715 * h * h * h)))
    # Linear 2: (B*S, 4D) @ (4D, D) -> (B*S, D).
    y = jnp.dot(h, w2_ref[...], preferred_element_type=jnp.float32) + b2

    out_ref[...] = y.astype(out_ref.dtype)
    # TODO(synk): nn.Dropout(config.dropout) is identity in eval mode; the
    # stochastic training-mode dropout is not modeled.


# -------------------------------- wrapper -----------------------------------
def mlp(x, w1, b1, w2, b2):
    """x: (B, S, D) -> (B, S, D). Linear weights stored (in, out); biases (1, out)."""
    Bx, Sx, Dx = x.shape
    rows = Bx * Sx
    # Fold batch+seq into the row (sublane) dim; reshape of a contiguous
    # row-major array is free on the host side.
    x2 = x.reshape(rows, Dx)

    def full_spec(arr):
        # Block = full array (allowed even when not (8,128)-divisible).
        return pl.BlockSpec(arr.shape, lambda i: (0,) * arr.ndim)

    out = pl.pallas_call(
        _mlp_kernel,
        out_shape=jax.ShapeDtypeStruct((rows, Dx), x.dtype),
        grid=(1,),  # single step: whole MLP in one invocation
        in_specs=[full_spec(a) for a in (x2, w1, b1, w2, b2)],
        out_specs=pl.BlockSpec((rows, Dx), lambda i: (0, 0)),
        compiler_params=pltpu.CompilerParams(
            dimension_semantics=("arbitrary",)),
    )(x2, w1, b1, w2, b2)
    return out.reshape(Bx, Sx, Dx)


# --------------------------- pure-JAX reference ------------------------------
def reference(x, w1, b1, w2, b2):
    h = x @ w1 + b1
    h = 0.5 * h * (1.0 + jnp.tanh(_GELU_C * (h + 0.044715 * h * h * h)))
    return h @ w2 + b2


# ---------------------------------- main -------------------------------------
if __name__ == "__main__":
    key = jax.random.PRNGKey(0)
    k_x, k_w1, k_b1, k_w2, k_b2 = jax.random.split(key, 5)

    x = jax.random.normal(k_x, (B, S, D), jnp.float32)
    w1 = jax.random.normal(k_w1, (D, D_FF), jnp.float32) * 0.05
    b1 = jax.random.normal(k_b1, (1, D_FF), jnp.float32) * 0.05
    w2 = jax.random.normal(k_w2, (D_FF, D), jnp.float32) * 0.05
    b2 = jax.random.normal(k_b2, (1, D), jnp.float32) * 0.05

    out = mlp(x, w1, b1, w2, b2)
    out = jax.block_until_ready(out)

    ref = reference(x, w1, b1, w2, b2)
    assert out.shape == (B, S, D)
    max_err = jnp.max(jnp.abs(out - ref))
    assert jnp.allclose(out, ref, rtol=2e-4, atol=2e-4), (
        f"max abs err = {max_err}")

    print("KERNEL_OK")
</pallas_src>

<mosaic_0001>
module attributes {stable_mosaic.version = 11 : i64} {
  func.func @_mlp_kernel(%arg0: i32, %arg1: memref<16x32xf32, #tpu.memory_space<vmem>>, %arg2: memref<32x128xf32, #tpu.memory_space<vmem>>, %arg3: memref<1x128xf32, #tpu.memory_space<vmem>>, %arg4: memref<128x32xf32, #tpu.memory_space<vmem>>, %arg5: memref<1x32xf32, #tpu.memory_space<vmem>>, %arg6: memref<16x32xf32, #tpu.memory_space<vmem>>) attributes {dimension_semantics = [#tpu.dimension_semantics<arbitrary>], iteration_bounds = array<i64: 1>, scalar_prefetch = 0 : i64, scratch_operands = 0 : i64, tpu.core_type = #tpu.core_type<tc>, window_params = [{pipeline_mode = #tpu.pipeline_mode<synchronous>, transform_indices = @transform_0, window_bounds = array<i64: 16, 32>}, {pipeline_mode = #tpu.pipeline_mode<synchronous>, transform_indices = @transform_1, window_bounds = array<i64: 32, 128>}, {pipeline_mode = #tpu.pipeline_mode<synchronous>, transform_indices = @transform_2, window_bounds = array<i64: 1, 128>}, {pipeline_mode = #tpu.pipeline_mode<synchronous>, transform_indices = @transform_3, window_bounds = array<i64: 128, 32>}, {pipeline_mode = #tpu.pipeline_mode<synchronous>, transform_indices = @transform_4, window_bounds = array<i64: 1, 32>}, {pipeline_mode = #tpu.pipeline_mode<synchronous>, transform_indices = @transform_5, window_bounds = array<i64: 16, 32>}]} {
    %c0 = arith.constant 0 : index
    %c0_0 = arith.constant 0 : index
    %0 = vector.load %arg1[%c0, %c0_0] : memref<16x32xf32, #tpu.memory_space<vmem>>, vector<16x32xf32>
    %c0_1 = arith.constant 0 : index
    %c0_2 = arith.constant 0 : index
    %1 = vector.load %arg3[%c0_1, %c0_2] : memref<1x128xf32, #tpu.memory_space<vmem>>, vector<1x128xf32>
    %c0_3 = arith.constant 0 : index
    %c0_4 = arith.constant 0 : index
    %2 = vector.load %arg5[%c0_3, %c0_4] : memref<1x32xf32, #tpu.memory_space<vmem>>, vector<1x32xf32>
    %c0_5 = arith.constant 0 : index
    %c0_6 = arith.constant 0 : index
    %3 = vector.load %arg2[%c0_5, %c0_6] : memref<32x128xf32, #tpu.memory_space<vmem>>, vector<32x128xf32>
    %cst = arith.constant dense<0.000000e+00> : vector<16x128xf32>
    %4 = tpu.matmul %0, %3, %cst {dimension_numbers = #tpu.dot_dimension_numbers<[1], [0], [0], [1], [0, 0, 1, 1], [], []>} : vector<16x32xf32>, vector<32x128xf32>, vector<16x128xf32> -> vector<16x128xf32>
    %5 = vector.broadcast %1 : vector<1x128xf32> to vector<16x128xf32>
    %6 = arith.addf %4, %5 : vector<16x128xf32>
    %cst_7 = arith.constant 5.000000e-01 : f32
    %7 = vector.broadcast %cst_7 : f32 to vector<16x128xf32>
    %8 = arith.mulf %7, %6 : vector<16x128xf32>
    %cst_8 = arith.constant 4.471500e-02 : f32
    %9 = vector.broadcast %cst_8 : f32 to vector<16x128xf32>
    %10 = arith.mulf %9, %6 : vector<16x128xf32>
    %11 = arith.mulf %10, %6 : vector<16x128xf32>
    %12 = arith.mulf %11, %6 : vector<16x128xf32>
    %13 = arith.addf %6, %12 : vector<16x128xf32>
    %cst_9 = arith.constant 0.797884583 : f32
    %14 = vector.broadcast %cst_9 : f32 to vector<16x128xf32>
    %15 = arith.mulf %14, %13 : vector<16x128xf32>
    %16 = math.tanh %15 : vector<16x128xf32>
    %cst_10 = arith.constant 1.000000e+00 : f32
    %17 = vector.broadcast %cst_10 : f32 to vector<16x128xf32>
    %18 = arith.addf %17, %16 : vector<16x128xf32>
    %19 = arith.mulf %8, %18 : vector<16x128xf32>
    %c0_11 = arith.constant 0 : index
    %c0_12 = arith.constant 0 : index
    %20 = vector.load %arg4[%c0_11, %c0_12] : memref<128x32xf32, #tpu.memory_space<vmem>>, vector<128x32xf32>
    %cst_13 = arith.constant dense<0.000000e+00> : vector<16x32xf32>
    %21 = tpu.matmul %19, %20, %cst_13 {dimension_numbers = #tpu.dot_dimension_numbers<[1], [0], [0], [1], [0, 0, 1, 1], [], []>} : vector<16x128xf32>, vector<128x32xf32>, vector<16x32xf32> -> vector<16x32xf32>
    %22 = vector.broadcast %2 : vector<1x32xf32> to vector<16x32xf32>
    %23 = arith.addf %21, %22 : vector<16x32xf32>
    %c0_14 = arith.constant 0 : index
    %c0_15 = arith.constant 0 : index
    %24 = vector.load %arg6[%c0_14, %c0_15] : memref<16x32xf32, #tpu.memory_space<vmem>>, vector<16x32xf32>
    tpu.vector_store %arg6[%c0_14, %c0_15], %23 {strides = array<i32>} : memref<16x32xf32, #tpu.memory_space<vmem>>, vector<16x32xf32>,
    return
  }
  func.func @transform_0(%arg0: i32) -> (i32, i32) {
    %c0_i32 = arith.constant 0 : i32
    %c0_i32_0 = arith.constant 0 : i32
    %c0_i32_1 = arith.constant 0 : i32
    return %c0_i32, %c0_i32_0 : i32, i32
  }
  func.func @transform_1(%arg0: i32) -> (i32, i32) {
    %c0_i32 = arith.constant 0 : i32
    %c0_i32_0 = arith.constant 0 : i32
    %c0_i32_1 = arith.constant 0 : i32
    return %c0_i32, %c0_i32_0 : i32, i32
  }
  func.func @transform_2(%arg0: i32) -> (i32, i32) {
    %c0_i32 = arith.constant 0 : i32
    %c0_i32_0 = arith.constant 0 : i32
    %c0_i32_1 = arith.constant 0 : i32
    return %c0_i32, %c0_i32_0 : i32, i32
  }
  func.func @transform_3(%arg0: i32) -> (i32, i32) {
    %c0_i32 = arith.constant 0 : i32
    %c0_i32_0 = arith.constant 0 : i32
    %c0_i32_1 = arith.constant 0 : i32
    return %c0_i32, %c0_i32_0 : i32, i32
  }
  func.func @transform_4(%arg0: i32) -> (i32, i32) {
    %c0_i32 = arith.constant 0 : i32
    %c0_i32_0 = arith.constant 0 : i32
    %c0_i32_1 = arith.constant 0 : i32
    return %c0_i32, %c0_i32_0 : i32, i32
  }
  func.func @transform_5(%arg0: i32) -> (i32, i32) {
    %c0_i32 = arith.constant 0 : i32
    %c0_i32_0 = arith.constant 0 : i32
    %c0_i32_1 = arith.constant 0 : i32
    return %c0_i32, %c0_i32_0 : i32, i32
  }
}

</mosaic_0001>

<llo_original>
// kernel: tpu_custom_call.1
$region0: #{tpu_custom_call.1}
  #allocation0 [shape = 'u32[]', space=smem, size = 0x4, offset = 0x4, fixed_abs, tag = 'smem constant byte address 0x4 - core index']
  #allocation1 [shape = 'u32[144,128]{1,0:T(1,128)}', space=vmem, size = 0x12000, scoped, tag = 'internal scratch']
  %s0 = inlined_call_operand.vmem [shape: f32[16,32], index: 0, kind: input, shape index: {}]
  %s1 = inlined_call_operand.vmem [shape: f32[32,128], index: 1, kind: input, shape index: {}]
  %s2 = inlined_call_operand.vmem [shape: f32[1,128], index: 2, kind: input, shape index: {}]
  %s3 = inlined_call_operand.vmem [shape: f32[128,32], index: 3, kind: input, shape index: {}]
  %s4 = inlined_call_operand.vmem [shape: f32[1,32], index: 4, kind: input, shape index: {}]
  %s5 = inlined_call_operand.hbm [shape: f32[16,32], index: 5, kind: output, shape index: {}]
  %s6 = sld [smem:[#allocation0]]
  $region30: #{tpu_custom_call.1} parent=0
    _
  %s8 = ssub.s32 1, %s6
  %s9 = scalar_select 0, %s8, %s6
  $region1: #{tpu_custom_call.1} parent=0
    #allocation2 [shape = 'u8[8192]{0}', space=vmem, size = 0x2000, scoped, tag = 'output window, operand 0, single buffered']
    #allocation3 [shape = 's32[1]{0}', space=sflag, size = 0x4, scoped, tag = 'scoped memory for tpu_custom_call.1']
    %10 = vsyncpa [#allocation3], 0
    // Predicated region
    $region2: #{tpu_custom_call.1} parent=1 // pred_check
      _
    $region3: #{tpu_custom_call.1} parent=1 // pred_check_branch
      %12 = sbr.rel (0) target = $region5
    $region4: #{tpu_custom_call.1} parent=1 // pred_region
      _
    $region5: #{tpu_custom_call.1} parent=1 // pred_fallthru
      _
    // Predicated region
    $region6: #{tpu_custom_call.1} parent=1 // pred_check
      _
    $region7: #{tpu_custom_call.1} parent=1 // pred_check_branch
      %14 = sbr.rel (0) target = $region9
    $region8: #{tpu_custom_call.1} parent=1 // pred_region
      _
    $region9: #{tpu_custom_call.1} parent=1 // pred_fallthru
      _
    // Predicated region
    $region10: #{tpu_custom_call.1} parent=1 // pred_check
      _
    $region11: #{tpu_custom_call.1} parent=1 // pred_check_branch
      %16 = sbr.rel (0) target = $region13
    $region12: #{tpu_custom_call.1} parent=1 // pred_region
      _
    $region13: #{tpu_custom_call.1} parent=1 // pred_fallthru
      _
    // Predicated region
    $region14: #{tpu_custom_call.1} parent=1 // pred_check
      _
    $region15: #{tpu_custom_call.1} parent=1 // pred_check_branch
      %18 = sbr.rel (0) target = $region17
    $region16: #{tpu_custom_call.1} parent=1 // pred_region
      _
    $region17: #{tpu_custom_call.1} parent=1 // pred_fallthru
      _
    // Predicated region
    $region18: #{tpu_custom_call.1} parent=1 // pred_check
      _
    $region19: #{tpu_custom_call.1} parent=1 // pred_check_branch
      %20 = sbr.rel (0) target = $region21
    $region20: #{tpu_custom_call.1} parent=1 // pred_region
      _
    $region21: #{tpu_custom_call.1} parent=1 // pred_fallthru
      _
    %v21 = vld [vmem:[%s0] sm:$0xff]
    %v22 = vld [vmem:[%s0 + $0x8] sm:$0xff]
    %v23 = vld [vmem:[%s2] sm:$0x1]
    %v24 = vld [vmem:[%s4] sm:$0x1]
    %v25 = vld [vmem:[%s1] sm:$0xff]
    %v26 = vld [vmem:[%s1 + $0x8] sm:$0xff]
    %v27 = vld [vmem:[%s1 + $0x10] sm:$0xff]
    %v28 = vld [vmem:[%s1 + $0x18] sm:$0xff]
    %v30 = vlaneseq
    %v31 = vshrl.u32 %v30, 7
    %v32 = vsub.s32 0, %v31
    %v33 = vrot.slane %v23, %v32
    %vm35 = vcmask 261120
    %v37 = vsel %vm35, %v21, 0
    %v40 = vsel %vm35, %v22, 0
    %42 = vmatprep.subr.mxu0 0.0
    %43 = vmatpush1.msra.mxu0 %v25
    %44 = vmatprep.subr.mxu0 0.0
    %45 = vmatpush1.msra.mxu0 %v26
    %46 = vmatprep.subr.mxu0 0.0
    %47 = vmatpush1.msra.mxu0 %v27
    %48 = vmatprep.subr.mxu0 0.0
    %49 = vmatpush1.msra.mxu0 %v28
    %50 = vmatprep.subr.mxu0 0.0
    %51 = vmatpush1.msra.mxu0 0.0
    %52 = vmatprep.subr.mxu0 0.0
    %53 = vmatpush1.msra.mxu0 0.0
    %54 = vmatprep.subr.mxu0 0.0
    %55 = vmatpush1.msra.mxu0 0.0
    %56 = vmatprep.subr.mxu0 0.0
    %57 = vmatpush1.msra.mxu0 0.0
    %58 = vmatprep.subr.mxu0 0.0
    %59 = vmatpush1.msra.mxu0 0.0
    %60 = vmatprep.subr.mxu0 0.0
    %61 = vmatpush1.msra.mxu0 0.0
    %62 = vmatprep.subr.mxu0 0.0
    %63 = vmatpush1.msra.mxu0 0.0
    %64 = vmatprep.subr.mxu0 0.0
    %65 = vmatpush1.msra.mxu0 0.0
    %66 = vmatprep.subr.mxu0 0.0
    %67 = vmatpush1.msra.mxu0 0.0
    %68 = vmatprep.subr.mxu0 0.0
    %69 = vmatpush1.msra.mxu0 0.0
    %70 = vmatprep.subr.mxu0 0.0
    %71 = vmatpush1.msra.mxu0 0.0
    %72 = vmatprep.subr.mxu0 0.0
    %73 = vmatpush1.msra.mxu0 0.0
    %74 = vmatprep.subr.mxu0 0.0
    %75 = vmatpush1.msra.mxu0 0.0
    %76 = vmatprep.subr.mxu0 0.0
    %77 = vmatpush1.msra.mxu0 0.0
    %78 = vmatprep.subr.mxu0 0.0
    %79 = vmatpush1.msra.mxu0 0.0
    %80 = vmatprep.subr.mxu0 0.0
    %81 = vmatpush1.msra.mxu0 0.0
    %82 = vmatprep.subr.mxu0 0.0
    %83 = vmatpush1.msra.mxu0 0.0
    %84 = vmatprep.subr.mxu0 0.0
    %85 = vmatpush1.msra.mxu0 0.0
    %86 = vmatprep.subr.mxu0 0.0
    %87 = vmatpush1.msra.mxu0 0.0
    %88 = vmatprep.subr.mxu0 0.0
    %89 = vmatpush1.msra.mxu0 0.0
    %90 = vmatprep.subr.mxu0 0.0
    %91 = vmatpush1.msra.mxu0 0.0
    %92 = vmatprep.subr.mxu0 0.0
    %93 = vmatpush1.msra.mxu0 0.0
    %94 = vmatprep.subr.mxu0 0.0
    %95 = vmatpush1.msra.mxu0 0.0
    %96 = vmatprep.subr.mxu0 0.0
    %97 = vmatpush1.msra.mxu0 0.0
    %98 = vmatprep.subr.mxu0 0.0
    %99 = vmatpush1.msra.mxu0 0.0
    %100 = vmatprep.subr.mxu0 0.0
    %101 = vmatpush1.msra.mxu0 0.0
    %102 = vmatprep.subr.mxu0 0.0
    %103 = vmatpush1.msra.mxu0 0.0
    %104 = vmatprep.subr.mxu0 0.0
    %105 = vmatpush1.msra.mxu0 0.0
    %106 = vmatprep.mubr.f32.mxu0 0.0
    %107 = vmatmul.mubr.f32.gmra.mrb[0].mxu0 %v37
    %v108 = vpop.f32.mrb[0].mxu0
    %v109 = vadd.f32 %v33, %v108
    %v110 = vpop.f32.mrb[0].mxu0
    %111 = vmatprep.mubr.f32.mxu0 0.0
    %112 = vmatmul.mubr.f32.gmra.mrb[0].mxu0 %v40
    %v113 = vpop.f32.mrb[0].mxu0
    %v114 = vadd.f32 %v33, %v113
    %v115 = vpop.f32.mrb[0].mxu0
    %116 = vdwg.mxu0
    %v117 = vmul.f32 %v109, 0.5
    %v118 = vmul.f32 %v114, 0.5
    %v119 = vmul.f32 %v109, 0.044715
    %v120 = vmul.f32 %v114, 0.044715
    %v121 = vmul.f32 %v119, %v109
    %v122 = vmul.f32 %v120, %v114
    %v123 = vmul.f32 %v121, %v109
    %v124 = vmul.f32 %v122, %v114
    %v125 = vadd.f32 %v109, %v123
    %v126 = vadd.f32 %v114, %v124
    %v127 = vmul.f32 %v125, 0.7978846
    %v128 = vmul.f32 %v126, 0.7978846
    %v129 = vtanh.pop %v127
    %v130 = vtanh.pop %v128
    %v131 = vadd.f32 %v129, 1.0
    %v132 = vadd.f32 %v130, 1.0
    %v133 = vmul.f32 %v117, %v131
    %v134 = vmul.f32 %v118, %v132
    %v135 = vld [vmem:[%s3] sm:$0xff]
    %v136 = vld [vmem:[%s3 + $0x8] sm:$0xff]
    %v137 = vld [vmem:[%s3 + $0x10] sm:$0xff]
    %v138 = vld [vmem:[%s3 + $0x18] sm:$0xff]
    %v139 = vld [vmem:[%s3 + $0x20] sm:$0xff]
    %v140 = vld [vmem:[%s3 + $0x28] sm:$0xff]
    %v141 = vld [vmem:[%s3 + $0x30] sm:$0xff]
    %v142 = vld [vmem:[%s3 + $0x38] sm:$0xff]
    %v143 = vld [vmem:[%s3 + $0x40] sm:$0xff]
    %v144 = vld [vmem:[%s3 + $0x48] sm:$0xff]
    %v145 = vld [vmem:[%s3 + $0x50] sm:$0xff]
    %v146 = vld [vmem:[%s3 + $0x58] sm:$0xff]
    %v147 = vld [vmem:[%s3 + $0x60] sm:$0xff]
    %v148 = vld [vmem:[%s3 + $0x68] sm:$0xff]
    %v149 = vld [vmem:[%s3 + $0x70] sm:$0xff]
    %v150 = vld [vmem:[%s3 + $0x78] sm:$0xff]
    %v152 = vlaneseq
    %v153 = vshrl.u32 %v152, 7
    %v154 = vsub.s32 0, %v153
    %v155 = vrot.slane %v24, %v154
    %157 = vmatprep.subr.mxu0 0.0
    %158 = vmatpush1.msra.mxu0 %v135
    %159 = vmatprep.subr.mxu0 0.0
    %160 = vmatpush1.msra.mxu0 %v136
    %161 = vmatprep.subr.mxu0 0.0
    %162 = vmatpush1.msra.mxu0 %v137
    %163 = vmatprep.subr.mxu0 0.0
    %164 = vmatpush1.msra.mxu0 %v138
    %165 = vmatprep.subr.mxu0 0.0
    %166 = vmatpush1.msra.mxu0 %v139
    %167 = vmatprep.subr.mxu0 0.0
    %168 = vmatpush1.msra.mxu0 %v140
    %169 = vmatprep.subr.mxu0 0.0
    %170 = vmatpush1.msra.mxu0 %v141
    %171 = vmatprep.subr.mxu0 0.0
    %172 = vmatpush1.msra.mxu0 %v142
    %173 = vmatprep.subr.mxu0 0.0
    %174 = vmatpush1.msra.mxu0 %v143
    %175 = vmatprep.subr.mxu0 0.0
    %176 = vmatpush1.msra.mxu0 %v144
    %177 = vmatprep.subr.mxu0 0.0
    %178 = vmatpush1.msra.mxu0 %v145
    %179 = vmatprep.subr.mxu0 0.0
    %180 = vmatpush1.msra.mxu0 %v146
    %181 = vmatprep.subr.mxu0 0.0
    %182 = vmatpush1.msra.mxu0 %v147
    %183 = vmatprep.subr.mxu0 0.0
    %184 = vmatpush1.msra.mxu0 %v148
    %185 = vmatprep.subr.mxu0 0.0
    %186 = vmatpush1.msra.mxu0 %v149
    %187 = vmatprep.subr.mxu0 0.0
    %188 = vmatpush1.msra.mxu0 %v150
    %189 = vmatprep.subr.mxu0 0.0
    %190 = vmatpush1.msra.mxu0 0.0
    %191 = vmatprep.subr.mxu0 0.0
    %192 = vmatpush1.msra.mxu0 0.0
    %193 = vmatprep.subr.mxu0 0.0
    %194 = vmatpush1.msra.mxu0 0.0
    %195 = vmatprep.subr.mxu0 0.0
    %196 = vmatpush1.msra.mxu0 0.0
    %197 = vmatprep.subr.mxu0 0.0
    %198 = vmatpush1.msra.mxu0 0.0
    %199 = vmatprep.subr.mxu0 0.0
    %200 = vmatpush1.msra.mxu0 0.0
    %201 = vmatprep.subr.mxu0 0.0
    %202 = vmatpush1.msra.mxu0 0.0
    %203 = vmatprep.subr.mxu0 0.0
    %204 = vmatpush1.msra.mxu0 0.0
    %205 = vmatprep.subr.mxu0 0.0
    %206 = vmatpush1.msra.mxu0 0.0
    %207 = vmatprep.subr.mxu0 0.0
    %208 = vmatpush1.msra.mxu0 0.0
    %209 = vmatprep.subr.mxu0 0.0
    %210 = vmatpush1.msra.mxu0 0.0
    %211 = vmatprep.subr.mxu0 0.0
    %212 = vmatpush1.msra.mxu0 0.0
    %213 = vmatprep.subr.mxu0 0.0
    %214 = vmatpush1.msra.mxu0 0.0
    %215 = vmatprep.subr.mxu0 0.0
    %216 = vmatpush1.msra.mxu0 0.0
    %217 = vmatprep.subr.mxu0 0.0
    %218 = vmatpush1.msra.mxu0 0.0
    %219 = vmatprep.subr.mxu0 0.0
    %220 = vmatpush1.msra.mxu0 0.0
    %221 = vmatprep.mubr.f32.mxu0 0.0
    %222 = vmatmul.mubr.f32.gmra.mrb[0].mxu0 %v133
    %v223 = vpop.f32.mrb[0].mxu0
    %v224 = vadd.f32 %v155, %v223
    %v225 = vpop.f32.mrb[0].mxu0
    %226 = vmatprep.mubr.f32.mxu0 0.0
    %227 = vmatmul.mubr.f32.gmra.mrb[0].mxu0 %v134
    %v228 = vpop.f32.mrb[0].mxu0
    %v229 = vadd.f32 %v155, %v228
    %v230 = vpop.f32.mrb[0].mxu0
    %231 = vdwg.mxu0
    %232 = vst.msk [vmem:[#allocation2] sm:$0xff] %vm35, %v224
    %233 = vst.msk [vmem:[#allocation2 + $0x8] sm:$0xff] %vm35, %v229
    // Predicated region
    $region22: #{tpu_custom_call.1} parent=1 // pred_check
      _
    $region23: #{tpu_custom_call.1} parent=1 // pred_check_branch
      %235 = sbr.rel (0) target = $region25
    $region24: #{tpu_custom_call.1} parent=1 // pred_region
      %s237 = ssub.s32 256, 256
      %238 = vsyncadd [#allocation3], %s237
      %s239 = sshll.u32 [#allocation2], 4
      %s240 = int_to_ptr.vmem [resolvable:$true] %s239
      %245 = dma.vmem_to_hbm [thread:$0]  %s240, 256, %s5, [#allocation3], 128, 128, 8
    $region25: #{tpu_custom_call.1} parent=1 // pred_fallthru
      _
    // Predicated region
    $region26: #{tpu_custom_call.1} parent=1 // pred_check
      _
    $region27: #{tpu_custom_call.1} parent=1 // pred_check_branch
      %247 = sbr.rel (0) target = $region29
    $region28: #{tpu_custom_call.1} parent=1 // pred_region
      %248 = dma.done [#allocation3], 256
    $region29: #{tpu_custom_call.1} parent=1 // pred_fallthru
      _
    %249 = vsyncpa [#allocation3], 1

</llo_original>
